<compile_context>
chip_gen: v7x
topology: tpu7x:2x2x1
jax: 0.10.0
libtpu: 0.0.40
codegen_flags: <defaults>
</compile_context>

<pallas_src>
import math

import jax
import jax.numpy as jnp
from jax.experimental import pallas as pl
from jax.experimental.pallas import tpu as pltpu  # noqa: F401  (TPU backend)

# ----------------------------- config (small, consistent with the module) ----
B = 2              # batch
S = 8              # q_len == kv_len (no cache)
HIDDEN = 32        # config.hidden_size
NUM_HEADS = 4      # config.num_attention_heads
HEAD_DIM = 8       # config.head_dim
NUM_KV_HEADS = 2   # config.num_key_value_heads  (GQA)
ROPE_THETA = 10000.0

Q_DIM = NUM_HEADS * HEAD_DIM          # 32
KV_DIM = NUM_KV_HEADS * HEAD_DIM      # 16
GROUPS = NUM_HEADS // NUM_KV_HEADS    # 2
MASK_VALUE = -1e30


# ----------------------------- fused forward kernel --------------------------
def _fused_attention_kernel(x_ref, wqkv_ref, wo_ref, cos_ref, sin_ref,
                            mask_ref, o_ref):
    """Entire attention forward, single invocation (no grid).

    x_ref:    (B*S, HIDDEN)
    wqkv_ref: (HIDDEN, 2*Q_DIM + 2*KV_DIM + KV_DIM)
              packed columns: [q | rotate_half(q) | k | rotate_half(k) | v],
              q columns pre-scaled by 1/sqrt(head_dim).
    wo_ref:   (Q_DIM, HIDDEN)   o_proj weight, pre-transposed.
    cos_ref/sin_ref: (B*S, Q_DIM) rotary tables tiled per head.
    mask_ref: (B*H*S, B*H*S) block-diagonal additive mask.
    o_ref:    (B*S, HIDDEN)
    """
    x = x_ref[...]

    # ---- fused q/k/v (+ pre-rotated q/k) projection: one MXU matmul --------
    qkv = jnp.dot(x, wqkv_ref[...], preferred_element_type=jnp.float32)
    q     = qkv[:, 0 * Q_DIM:1 * Q_DIM]
    q_rot = qkv[:, 1 * Q_DIM:2 * Q_DIM]
    k     = qkv[:, 2 * Q_DIM:2 * Q_DIM + KV_DIM]
    k_rot = qkv[:, 2 * Q_DIM + KV_DIM:2 * Q_DIM + 2 * KV_DIM]
    v     = qkv[:, 2 * Q_DIM + 2 * KV_DIM:]

    # ---- RoPE: purely elementwise (rotate_half baked into the weights) -----
    cos = cos_ref[...]
    sin = sin_ref[...]
    q_e = q * cos + q_rot * sin                        # already 1/sqrt(D)-scaled
    k_e = k * cos[:, :KV_DIM] + k_rot * sin[:, :KV_DIM]

    # ---- pack every (batch, head) block into one head-batched matmul -------
    def blockify(src, head_map):
        blocks = [
            src[b * S:(b + 1) * S,
                head_map(h) * HEAD_DIM:(head_map(h) + 1) * HEAD_DIM]
            for b in range(B) for h in range(NUM_HEADS)
        ]
        return jnp.concatenate(blocks, axis=0)         # (B*H*S, HEAD_DIM)

    q_big = blockify(q_e, lambda h: h)
    k_big = blockify(k_e, lambda h: h // GROUPS)       # GQA repeat_interleave map
    v_big = blockify(v, lambda h: h // GROUPS)

    # One (64 x 8) @ (8 x 64) matmul for all batches/heads; cross-block terms
    # are killed by the block-diagonal mask.
    scores = jax.lax.dot_general(
        q_big, k_big, (((1,), (1,)), ((), ())),
        preferred_element_type=jnp.float32) + mask_ref[...]

    # ---- softmax in fp32, reciprocal on the EUP -----------------------------
    m = jnp.max(scores, axis=-1, keepdims=True)
    p = jnp.exp(scores - m)
    denom = jnp.sum(p, axis=-1, keepdims=True)
    probs = p * pl.reciprocal(denom, approx=True)

    o_big = jnp.dot(probs, v_big, preferred_element_type=jnp.float32)  # (BHS, D)

    # ---- back to lane-dense (B*S, H*D), then fused o_proj -------------------
    attn = jnp.concatenate(
        [
            jnp.concatenate(
                [o_big[(b * NUM_HEADS + h) * S:(b * NUM_HEADS + h + 1) * S, :]
                 for b in range(B)],
                axis=0)
            for h in range(NUM_HEADS)
        ],
        axis=1)                                        # (B*S, H*D)

    o_ref[...] = jnp.dot(attn, wo_ref[...],
                         preferred_element_type=jnp.float32).astype(o_ref.dtype)


# ----------------------------- host-side weight packing ----------------------
def _rotate_half_matrix(num_heads, head_dim):
    """Constant matrix R with (x @ R) == rotate_half(x) applied per head chunk."""
    half = head_dim // 2
    blk = jnp.block([
        [jnp.zeros((half, half), jnp.float32), jnp.eye(half, dtype=jnp.float32)],
        [-jnp.eye(half, dtype=jnp.float32), jnp.zeros((half, half), jnp.float32)],
    ])
    return jnp.kron(jnp.eye(num_heads, dtype=jnp.float32), blk)


def pack_params(wq, wk, wv, wo):
    """One-time packing: transpose, concat q/k/v, fold 1/sqrt(head_dim) and the
    rotate_half permutation into extra weight columns."""
    scale = 1.0 / math.sqrt(HEAD_DIM)
    rq = _rotate_half_matrix(NUM_HEADS, HEAD_DIM)
    rk = _rotate_half_matrix(NUM_KV_HEADS, HEAD_DIM)
    wq_t = wq.T * scale                       # (HIDDEN, Q_DIM), pre-scaled
    wk_t = wk.T                               # (HIDDEN, KV_DIM)
    wqkv_t = jnp.concatenate(
        [wq_t, wq_t @ rq, wk_t, wk_t @ rk, wv.T], axis=1)   # (HIDDEN, 112)
    return wqkv_t, wo.T                       # wo.T: (Q_DIM, HIDDEN)


# ----------------------------- rotary tables ---------------------------------
def rotary_cos_sin(position_ids, head_dim, base, dtype):
    inv_freq = 1.0 / (base ** (jnp.arange(0, head_dim, 2, dtype=jnp.float32) / head_dim))
    freqs = position_ids[:, :, None].astype(jnp.float32) * inv_freq[None, None, :]
    emb = jnp.concatenate([freqs, freqs], axis=-1)       # (B, S, D)
    return jnp.cos(emb).astype(dtype), jnp.sin(emb).astype(dtype)


# ----------------------------- forward wrapper --------------------------------
def mistral_attention_morph_forward(hidden_states, attention_mask, position_ids,
                                    packed_params):
    """Forward of MistralAttentionMorph (no past_key_value, morphkv disabled,
    attention_dropout = 0, output_attentions = False)."""
    # TODO(synk): past_key_value.update / morphkv top-k eviction / query_cache
    # are stateful cache bookkeeping with no in-kernel equivalent; the math
    # path (projections, RoPE, SDPA, o_proj) is fully fused into one kernel.
    wqkv_t, wo_t = packed_params
    bsz, q_len, hidden = hidden_states.shape
    x2d = hidden_states.reshape(bsz * q_len, hidden)     # free reshape

    cos, sin = rotary_cos_sin(position_ids, HEAD_DIM, ROPE_THETA,
                              hidden_states.dtype)
    cos_t = jnp.tile(cos.reshape(bsz * q_len, HEAD_DIM), (1, NUM_HEADS))
    sin_t = jnp.tile(sin.reshape(bsz * q_len, HEAD_DIM), (1, NUM_HEADS))

    # Block-diagonal additive mask over (batch, head) blocks so all heads can
    # be scored in a single matmul inside the kernel.
    n = bsz * NUM_HEADS * q_len
    idx = jnp.arange(n)
    blk = idx // q_len                  # = b*H + h
    seq = idx % q_len
    b_of = blk // NUM_HEADS
    am = attention_mask[:, 0]           # (B, S, S)
    gathered = am[b_of[:, None], seq[:, None], seq[None, :]]
    big_mask = jnp.where(blk[:, None] == blk[None, :], gathered,
                         MASK_VALUE).astype(jnp.float32)

    out2d = pl.pallas_call(
        _fused_attention_kernel,
        out_shape=jax.ShapeDtypeStruct((bsz * q_len, hidden),
                                       hidden_states.dtype),
    )(x2d, wqkv_t, wo_t, cos_t, sin_t, big_mask)
    return out2d.reshape(bsz, q_len, hidden)


# ----------------------------- pure-JAX reference -----------------------------
def reference_forward(hidden_states, attention_mask, position_ids, params):
    wq, wk, wv, wo = params
    bsz, q_len, _ = hidden_states.shape
    q = (hidden_states @ wq.T).reshape(bsz, q_len, NUM_HEADS, HEAD_DIM).transpose(0, 2, 1, 3)
    k = (hidden_states @ wk.T).reshape(bsz, q_len, NUM_KV_HEADS, HEAD_DIM).transpose(0, 2, 1, 3)
    v = (hidden_states @ wv.T).reshape(bsz, q_len, NUM_KV_HEADS, HEAD_DIM).transpose(0, 2, 1, 3)
    cos, sin = rotary_cos_sin(position_ids, HEAD_DIM, ROPE_THETA, hidden_states.dtype)
    cos_u, sin_u = cos[:, None], sin[:, None]

    def rot_half(x):
        h = x.shape[-1] // 2
        return jnp.concatenate([-x[..., h:], x[..., :h]], axis=-1)

    q = q * cos_u + rot_half(q) * sin_u
    k = k * cos_u + rot_half(k) * sin_u
    n_rep = NUM_HEADS // NUM_KV_HEADS
    k = jnp.repeat(k, n_rep, axis=1)
    v = jnp.repeat(v, n_rep, axis=1)
    scores = jnp.einsum("bhqd,bhkd->bhqk", q, k) / math.sqrt(HEAD_DIM)
    scores = scores + attention_mask
    probs = jax.nn.softmax(scores.astype(jnp.float32), axis=-1).astype(q.dtype)
    out = jnp.einsum("bhqk,bhkd->bhqd", probs, v)
    out = out.transpose(0, 2, 1, 3).reshape(bsz, q_len, NUM_HEADS * HEAD_DIM)
    return out @ wo.T


# ----------------------------- main -------------------------------------------
if __name__ == "__main__":
    key = jax.random.PRNGKey(0)
    k1, k2, k3, k4, k5 = jax.random.split(key, 5)

    hidden_states = jax.random.normal(k1, (B, S, HIDDEN), jnp.float32)
    # nn.Linear weights (out_features, in_features), bias=False
    wq = jax.random.normal(k2, (Q_DIM, HIDDEN), jnp.float32) * 0.05
    wk = jax.random.normal(k3, (KV_DIM, HIDDEN), jnp.float32) * 0.05
    wv = jax.random.normal(k4, (KV_DIM, HIDDEN), jnp.float32) * 0.05
    wo = jax.random.normal(k5, (HIDDEN, Q_DIM), jnp.float32) * 0.05
    params = (wq, wk, wv, wo)
    packed = pack_params(wq, wk, wv, wo)   # one-time, outside jit

    position_ids = jnp.broadcast_to(jnp.arange(S, dtype=jnp.int32), (B, S))
    causal = jnp.where(
        jnp.arange(S)[:, None] >= jnp.arange(S)[None, :], 0.0, MASK_VALUE
    ).astype(jnp.float32)
    attention_mask = jnp.broadcast_to(causal, (B, 1, S, S))

    out = jax.jit(mistral_attention_morph_forward)(
        hidden_states, attention_mask, position_ids, packed
    )
    out = jax.block_until_ready(out)

    ref = reference_forward(hidden_states, attention_mask, position_ids, params)
    # Slightly loose tolerance: approx EUP reciprocal in the softmax denominator.
    assert jnp.allclose(out, ref, atol=5e-3, rtol=5e-3), float(
        jnp.max(jnp.abs(out - ref))
    )
    print("KERNEL_OK")
</pallas_src>

<mosaic_0001>
module attributes {stable_mosaic.version = 11 : i64} {
  func.func @_fused_attention_kernel(%arg0: memref<16x32xf32, #tpu.memory_space<vmem>>, %arg1: memref<32x112xf32, #tpu.memory_space<vmem>>, %arg2: memref<32x32xf32, #tpu.memory_space<vmem>>, %arg3: memref<16x32xf32, #tpu.memory_space<vmem>>, %arg4: memref<16x32xf32, #tpu.memory_space<vmem>>, %arg5: memref<64x64xf32, #tpu.memory_space<vmem>>, %arg6: memref<16x32xf32, #tpu.memory_space<vmem>>) attributes {dimension_semantics = [], scalar_prefetch = 0 : i64, scratch_operands = 0 : i64, tpu.core_type = #tpu.core_type<tc>} {
    %c0 = arith.constant 0 : index
    %c0_0 = arith.constant 0 : index
    %0 = vector.load %arg0[%c0, %c0_0] : memref<16x32xf32, #tpu.memory_space<vmem>>, vector<16x32xf32>
    %c0_1 = arith.constant 0 : index
    %c0_2 = arith.constant 0 : index
    %1 = vector.load %arg1[%c0_1, %c0_2] : memref<32x112xf32, #tpu.memory_space<vmem>>, vector<32x112xf32>
    %cst = arith.constant dense<0.000000e+00> : vector<16x112xf32>
    %2 = tpu.matmul %0, %1, %cst {dimension_numbers = #tpu.dot_dimension_numbers<[1], [0], [0], [1], [0, 0, 1, 1], [], []>} : vector<16x32xf32>, vector<32x112xf32>, vector<16x112xf32> -> vector<16x112xf32>
    %3 = vector.extract_strided_slice %2 {offsets = [0, 0], sizes = [16, 32], strides = [1, 1]} : vector<16x112xf32> to vector<16x32xf32>
    %4 = vector.extract_strided_slice %2 {offsets = [0, 32], sizes = [16, 32], strides = [1, 1]} : vector<16x112xf32> to vector<16x32xf32>
    %5 = vector.extract_strided_slice %2 {offsets = [0, 64], sizes = [16, 16], strides = [1, 1]} : vector<16x112xf32> to vector<16x16xf32>
    %6 = vector.extract_strided_slice %2 {offsets = [0, 80], sizes = [16, 16], strides = [1, 1]} : vector<16x112xf32> to vector<16x16xf32>
    %7 = vector.extract_strided_slice %2 {offsets = [0, 96], sizes = [16, 16], strides = [1, 1]} : vector<16x112xf32> to vector<16x16xf32>
    %c0_3 = arith.constant 0 : index
    %c0_4 = arith.constant 0 : index
    %8 = vector.load %arg3[%c0_3, %c0_4] : memref<16x32xf32, #tpu.memory_space<vmem>>, vector<16x32xf32>
    %c0_5 = arith.constant 0 : index
    %c0_6 = arith.constant 0 : index
    %9 = vector.load %arg4[%c0_5, %c0_6] : memref<16x32xf32, #tpu.memory_space<vmem>>, vector<16x32xf32>
    %10 = arith.mulf %3, %8 : vector<16x32xf32>
    %11 = arith.mulf %4, %9 : vector<16x32xf32>
    %12 = arith.addf %10, %11 : vector<16x32xf32>
    %13 = vector.extract_strided_slice %8 {offsets = [0, 0], sizes = [16, 16], strides = [1, 1]} : vector<16x32xf32> to vector<16x16xf32>
    %14 = arith.mulf %5, %13 : vector<16x16xf32>
    %15 = vector.extract_strided_slice %9 {offsets = [0, 0], sizes = [16, 16], strides = [1, 1]} : vector<16x32xf32> to vector<16x16xf32>
    %16 = arith.mulf %6, %15 : vector<16x16xf32>
    %17 = arith.addf %14, %16 : vector<16x16xf32>
    %18 = vector.extract_strided_slice %12 {offsets = [0, 0], sizes = [8, 8], strides = [1, 1]} : vector<16x32xf32> to vector<8x8xf32>
    %19 = vector.extract_strided_slice %12 {offsets = [0, 8], sizes = [8, 8], strides = [1, 1]} : vector<16x32xf32> to vector<8x8xf32>
    %20 = vector.extract_strided_slice %12 {offsets = [0, 16], sizes = [8, 8], strides = [1, 1]} : vector<16x32xf32> to vector<8x8xf32>
    %21 = vector.extract_strided_slice %12 {offsets = [0, 24], sizes = [8, 8], strides = [1, 1]} : vector<16x32xf32> to vector<8x8xf32>
    %22 = vector.extract_strided_slice %12 {offsets = [8, 0], sizes = [8, 8], strides = [1, 1]} : vector<16x32xf32> to vector<8x8xf32>
    %23 = vector.extract_strided_slice %12 {offsets = [8, 8], sizes = [8, 8], strides = [1, 1]} : vector<16x32xf32> to vector<8x8xf32>
    %24 = vector.extract_strided_slice %12 {offsets = [8, 16], sizes = [8, 8], strides = [1, 1]} : vector<16x32xf32> to vector<8x8xf32>
    %25 = vector.extract_strided_slice %12 {offsets = [8, 24], sizes = [8, 8], strides = [1, 1]} : vector<16x32xf32> to vector<8x8xf32>
    %26 = tpu.concatenate %18, %19, %20, %21, %22, %23, %24, %25 in 0 : vector<8x8xf32>, vector<8x8xf32>, vector<8x8xf32>, vector<8x8xf32>, vector<8x8xf32>, vector<8x8xf32>, vector<8x8xf32>, vector<8x8xf32> -> vector<64x8xf32>
    %27 = vector.extract_strided_slice %17 {offsets = [0, 0], sizes = [8, 8], strides = [1, 1]} : vector<16x16xf32> to vector<8x8xf32>
    %28 = vector.extract_strided_slice %17 {offsets = [0, 0], sizes = [8, 8], strides = [1, 1]} : vector<16x16xf32> to vector<8x8xf32>
    %29 = vector.extract_strided_slice %17 {offsets = [0, 8], sizes = [8, 8], strides = [1, 1]} : vector<16x16xf32> to vector<8x8xf32>
    %30 = vector.extract_strided_slice %17 {offsets = [0, 8], sizes = [8, 8], strides = [1, 1]} : vector<16x16xf32> to vector<8x8xf32>
    %31 = vector.extract_strided_slice %17 {offsets = [8, 0], sizes = [8, 8], strides = [1, 1]} : vector<16x16xf32> to vector<8x8xf32>
    %32 = vector.extract_strided_slice %17 {offsets = [8, 0], sizes = [8, 8], strides = [1, 1]} : vector<16x16xf32> to vector<8x8xf32>
    %33 = vector.extract_strided_slice %17 {offsets = [8, 8], sizes = [8, 8], strides = [1, 1]} : vector<16x16xf32> to vector<8x8xf32>
    %34 = vector.extract_strided_slice %17 {offsets = [8, 8], sizes = [8, 8], strides = [1, 1]} : vector<16x16xf32> to vector<8x8xf32>
    %35 = tpu.concatenate %27, %28, %29, %30, %31, %32, %33, %34 in 0 : vector<8x8xf32>, vector<8x8xf32>, vector<8x8xf32>, vector<8x8xf32>, vector<8x8xf32>, vector<8x8xf32>, vector<8x8xf32>, vector<8x8xf32> -> vector<64x8xf32>
    %36 = vector.extract_strided_slice %7 {offsets = [0, 0], sizes = [8, 8], strides = [1, 1]} : vector<16x16xf32> to vector<8x8xf32>
    %37 = vector.extract_strided_slice %7 {offsets = [0, 0], sizes = [8, 8], strides = [1, 1]} : vector<16x16xf32> to vector<8x8xf32>
    %38 = vector.extract_strided_slice %7 {offsets = [0, 8], sizes = [8, 8], strides = [1, 1]} : vector<16x16xf32> to vector<8x8xf32>
    %39 = vector.extract_strided_slice %7 {offsets = [0, 8], sizes = [8, 8], strides = [1, 1]} : vector<16x16xf32> to vector<8x8xf32>
    %40 = vector.extract_strided_slice %7 {offsets = [8, 0], sizes = [8, 8], strides = [1, 1]} : vector<16x16xf32> to vector<8x8xf32>
    %41 = vector.extract_strided_slice %7 {offsets = [8, 0], sizes = [8, 8], strides = [1, 1]} : vector<16x16xf32> to vector<8x8xf32>
    %42 = vector.extract_strided_slice %7 {offsets = [8, 8], sizes = [8, 8], strides = [1, 1]} : vector<16x16xf32> to vector<8x8xf32>
    %43 = vector.extract_strided_slice %7 {offsets = [8, 8], sizes = [8, 8], strides = [1, 1]} : vector<16x16xf32> to vector<8x8xf32>
    %44 = tpu.concatenate %36, %37, %38, %39, %40, %41, %42, %43 in 0 : vector<8x8xf32>, vector<8x8xf32>, vector<8x8xf32>, vector<8x8xf32>, vector<8x8xf32>, vector<8x8xf32>, vector<8x8xf32>, vector<8x8xf32> -> vector<64x8xf32>
    %cst_7 = arith.constant dense<0.000000e+00> : vector<64x64xf32>
    %45 = tpu.matmul %26, %35, %cst_7 {dimension_numbers = #tpu.dot_dimension_numbers<[1], [1], [0], [0], [0, 0, 1, 0], [], []>} : vector<64x8xf32>, vector<64x8xf32>, vector<64x64xf32> -> vector<64x64xf32>
    %c0_8 = arith.constant 0 : index
    %c0_9 = arith.constant 0 : index
    %46 = vector.load %arg5[%c0_8, %c0_9] : memref<64x64xf32, #tpu.memory_space<vmem>>, vector<64x64xf32>
    %47 = arith.addf %45, %46 : vector<64x64xf32>
    %cst_10 = arith.constant dense<0xFF800000> : vector<64xf32>
    %48 = vector.multi_reduction <maximumf>, %47, %cst_10 [1] : vector<64x64xf32> to vector<64xf32>
    %49 = vector.shape_cast %48 : vector<64xf32> to vector<64x1xf32>
    %50 = vector.broadcast %49 : vector<64x1xf32> to vector<64x64xf32>
    %51 = arith.subf %47, %50 : vector<64x64xf32>
    %52 = math.exp %51 : vector<64x64xf32>
    %cst_11 = arith.constant dense<0.000000e+00> : vector<64xf32>
    %53 = vector.multi_reduction <add>, %52, %cst_11 [1] : vector<64x64xf32> to vector<64xf32>
    %54 = vector.shape_cast %53 : vector<64xf32> to vector<64x1xf32>
    %55 = tpu.reciprocal %54 {approx = true} : vector<64x1xf32> -> vector<64x1xf32>
    %56 = vector.broadcast %55 : vector<64x1xf32> to vector<64x64xf32>
    %57 = arith.mulf %52, %56 : vector<64x64xf32>
    %cst_12 = arith.constant dense<0.000000e+00> : vector<64x8xf32>
    %58 = tpu.matmul %57, %44, %cst_12 {dimension_numbers = #tpu.dot_dimension_numbers<[1], [0], [0], [1], [0, 0, 1, 1], [], []>} : vector<64x64xf32>, vector<64x8xf32>, vector<64x8xf32> -> vector<64x8xf32>
    %59 = vector.extract_strided_slice %58 {offsets = [0, 0], sizes = [8, 8], strides = [1, 1]} : vector<64x8xf32> to vector<8x8xf32>
    %60 = vector.extract_strided_slice %58 {offsets = [32, 0], sizes = [8, 8], strides = [1, 1]} : vector<64x8xf32> to vector<8x8xf32>
    %61 = tpu.concatenate %59, %60 in 0 : vector<8x8xf32>, vector<8x8xf32> -> vector<16x8xf32>
    %62 = vector.extract_strided_slice %58 {offsets = [8, 0], sizes = [8, 8], strides = [1, 1]} : vector<64x8xf32> to vector<8x8xf32>
    %63 = vector.extract_strided_slice %58 {offsets = [40, 0], sizes = [8, 8], strides = [1, 1]} : vector<64x8xf32> to vector<8x8xf32>
    %64 = tpu.concatenate %62, %63 in 0 : vector<8x8xf32>, vector<8x8xf32> -> vector<16x8xf32>
    %65 = vector.extract_strided_slice %58 {offsets = [16, 0], sizes = [8, 8], strides = [1, 1]} : vector<64x8xf32> to vector<8x8xf32>
    %66 = vector.extract_strided_slice %58 {offsets = [48, 0], sizes = [8, 8], strides = [1, 1]} : vector<64x8xf32> to vector<8x8xf32>
    %67 = tpu.concatenate %65, %66 in 0 : vector<8x8xf32>, vector<8x8xf32> -> vector<16x8xf32>
    %68 = vector.extract_strided_slice %58 {offsets = [24, 0], sizes = [8, 8], strides = [1, 1]} : vector<64x8xf32> to vector<8x8xf32>
    %69 = vector.extract_strided_slice %58 {offsets = [56, 0], sizes = [8, 8], strides = [1, 1]} : vector<64x8xf32> to vector<8x8xf32>
    %70 = tpu.concatenate %68, %69 in 0 : vector<8x8xf32>, vector<8x8xf32> -> vector<16x8xf32>
    %71 = tpu.concatenate %61, %64, %67, %70 in 1 : vector<16x8xf32>, vector<16x8xf32>, vector<16x8xf32>, vector<16x8xf32> -> vector<16x32xf32>
    %c0_13 = arith.constant 0 : index
    %c0_14 = arith.constant 0 : index
    %72 = vector.load %arg2[%c0_13, %c0_14] : memref<32x32xf32, #tpu.memory_space<vmem>>, vector<32x32xf32>
    %cst_15 = arith.constant dense<0.000000e+00> : vector<16x32xf32>
    %73 = tpu.matmul %71, %72, %cst_15 {dimension_numbers = #tpu.dot_dimension_numbers<[1], [0], [0], [1], [0, 0, 1, 1], [], []>} : vector<16x32xf32>, vector<32x32xf32>, vector<16x32xf32> -> vector<16x32xf32>
    %c0_16 = arith.constant 0 : index
    %c0_17 = arith.constant 0 : index
    %74 = vector.load %arg6[%c0_16, %c0_17] : memref<16x32xf32, #tpu.memory_space<vmem>>, vector<16x32xf32>
    tpu.vector_store %arg6[%c0_16, %c0_17], %73 {strides = array<i32>} : memref<16x32xf32, #tpu.memory_space<vmem>>, vector<16x32xf32>,
    return
  }
}

</mosaic_0001>

<llo_original>
// kernel: mistral_attention_morph_forward.1
$region0: #{mistral_attention_morph_forward.1}
  #allocation0 [shape = 'u32[]', space=smem, size = 0x4, offset = 0x4, fixed_abs, tag = 'smem constant byte address 0x4 - core index']
  #allocation1 [shape = 'u32[144,128]{1,0:T(1,128)}', space=vmem, size = 0x12000, scoped, tag = 'internal scratch']
  %s0 = inlined_call_operand.vmem [shape: f32[16,32], index: 0, kind: input, shape index: {}]
  %s1 = inlined_call_operand.vmem [shape: f32[32,112], index: 1, kind: input, shape index: {}]
  %s2 = inlined_call_operand.vmem [shape: f32[32,32], index: 2, kind: input, shape index: {}]
  %s3 = inlined_call_operand.vmem [shape: f32[16,32], index: 3, kind: input, shape index: {}]
  %s4 = inlined_call_operand.vmem [shape: f32[16,32], index: 4, kind: input, shape index: {}]
  %s5 = inlined_call_operand.vmem [shape: f32[64,64], index: 5, kind: input, shape index: {}]
  %s6 = inlined_call_operand.hbm [shape: f32[16,32], index: 6, kind: output, shape index: {}]
  %s7 = sld [smem:[#allocation0]]
  $region34: #{mistral_attention_morph_forward.1} parent=0
    _
  %s9 = ssub.s32 1, %s7
  %s10 = scalar_select 0, %s9, %s7
  $region1: #{mistral_attention_morph_forward.1} parent=0
    #allocation2 [shape = 'u8[8192]{0}', space=vmem, size = 0x2000, scoped, tag = 'output window, operand 0, single buffered']
    #allocation3 [shape = 's32[1]{0}', space=sflag, size = 0x4, scoped, tag = 'scoped memory for mistral_attention_morph_forward.1']
    %11 = vsyncpa [#allocation3], 0
    // Predicated region
    $region2: #{mistral_attention_morph_forward.1} parent=1 // pred_check
      _
    $region3: #{mistral_attention_morph_forward.1} parent=1 // pred_check_branch
      %13 = sbr.rel (0) target = $region5
    $region4: #{mistral_attention_morph_forward.1} parent=1 // pred_region
      _
    $region5: #{mistral_attention_morph_forward.1} parent=1 // pred_fallthru
      _
    // Predicated region
    $region6: #{mistral_attention_morph_forward.1} parent=1 // pred_check
      _
    $region7: #{mistral_attention_morph_forward.1} parent=1 // pred_check_branch
      %15 = sbr.rel (0) target = $region9
    $region8: #{mistral_attention_morph_forward.1} parent=1 // pred_region
      _
    $region9: #{mistral_attention_morph_forward.1} parent=1 // pred_fallthru
      _
    // Predicated region
    $region10: #{mistral_attention_morph_forward.1} parent=1 // pred_check
      _
    $region11: #{mistral_attention_morph_forward.1} parent=1 // pred_check_branch
      %17 = sbr.rel (0) target = $region13
    $region12: #{mistral_attention_morph_forward.1} parent=1 // pred_region
      _
    $region13: #{mistral_attention_morph_forward.1} parent=1 // pred_fallthru
      _
    // Predicated region
    $region14: #{mistral_attention_morph_forward.1} parent=1 // pred_check
      _
    $region15: #{mistral_attention_morph_forward.1} parent=1 // pred_check_branch
      %19 = sbr.rel (0) target = $region17
    $region16: #{mistral_attention_morph_forward.1} parent=1 // pred_region
      _
    $region17: #{mistral_attention_morph_forward.1} parent=1 // pred_fallthru
      _
    // Predicated region
    $region18: #{mistral_attention_morph_forward.1} parent=1 // pred_check
      _
    $region19: #{mistral_attention_morph_forward.1} parent=1 // pred_check_branch
      %21 = sbr.rel (0) target = $region21
    $region20: #{mistral_attention_morph_forward.1} parent=1 // pred_region
      _
    $region21: #{mistral_attention_morph_forward.1} parent=1 // pred_fallthru
      _
    // Predicated region
    $region22: #{mistral_attention_morph_forward.1} parent=1 // pred_check
      _
    $region23: #{mistral_attention_morph_forward.1} parent=1 // pred_check_branch
      %23 = sbr.rel (0) target = $region25
    $region24: #{mistral_attention_morph_forward.1} parent=1 // pred_region
      _
    $region25: #{mistral_attention_morph_forward.1} parent=1 // pred_fallthru
      _
    %v24 = vld [vmem:[%s0] sm:$0xff]
    %v25 = vld [vmem:[%s0 + $0x8] sm:$0xff]
    %v26 = vld [vmem:[%s1] sm:$0xff]
    %v27 = vld [vmem:[%s1 + $0x8] sm:$0xff]
    %v28 = vld [vmem:[%s1 + $0x10] sm:$0xff]
    %v29 = vld [vmem:[%s1 + $0x18] sm:$0xff]
    %vm30 = vcmask 261120
    %v32 = vsel %vm30, %v24, 0
    %v35 = vsel %vm30, %v25, 0
    %37 = vmatprep.subr.mxu0 0.0
    %38 = vmatpush1.msra.mxu0 %v26
    %39 = vmatprep.subr.mxu0 0.0
    %40 = vmatpush1.msra.mxu0 %v27
    %41 = vmatprep.subr.mxu0 0.0
    %42 = vmatpush1.msra.mxu0 %v28
    %43 = vmatprep.subr.mxu0 0.0
    %44 = vmatpush1.msra.mxu0 %v29
    %45 = vmatprep.subr.mxu0 0.0
    %46 = vmatpush1.msra.mxu0 0.0
    %47 = vmatprep.subr.mxu0 0.0
    %48 = vmatpush1.msra.mxu0 0.0
    %49 = vmatprep.subr.mxu0 0.0
    %50 = vmatpush1.msra.mxu0 0.0
    %51 = vmatprep.subr.mxu0 0.0
    %52 = vmatpush1.msra.mxu0 0.0
    %53 = vmatprep.subr.mxu0 0.0
    %54 = vmatpush1.msra.mxu0 0.0
    %55 = vmatprep.subr.mxu0 0.0
    %56 = vmatpush1.msra.mxu0 0.0
    %57 = vmatprep.subr.mxu0 0.0
    %58 = vmatpush1.msra.mxu0 0.0
    %59 = vmatprep.subr.mxu0 0.0
    %60 = vmatpush1.msra.mxu0 0.0
    %61 = vmatprep.subr.mxu0 0.0
    %62 = vmatpush1.msra.mxu0 0.0
    %63 = vmatprep.subr.mxu0 0.0
    %64 = vmatpush1.msra.mxu0 0.0
    %65 = vmatprep.subr.mxu0 0.0
    %66 = vmatpush1.msra.mxu0 0.0
    %67 = vmatprep.subr.mxu0 0.0
    %68 = vmatpush1.msra.mxu0 0.0
    %69 = vmatprep.subr.mxu0 0.0
    %70 = vmatpush1.msra.mxu0 0.0
    %71 = vmatprep.subr.mxu0 0.0
    %72 = vmatpush1.msra.mxu0 0.0
    %73 = vmatprep.subr.mxu0 0.0
    %74 = vmatpush1.msra.mxu0 0.0
    %75 = vmatprep.subr.mxu0 0.0
    %76 = vmatpush1.msra.mxu0 0.0
    %77 = vmatprep.subr.mxu0 0.0
    %78 = vmatpush1.msra.mxu0 0.0
    %79 = vmatprep.subr.mxu0 0.0
    %80 = vmatpush1.msra.mxu0 0.0
    %81 = vmatprep.subr.mxu0 0.0
    %82 = vmatpush1.msra.mxu0 0.0
    %83 = vmatprep.subr.mxu0 0.0
    %84 = vmatpush1.msra.mxu0 0.0
    %85 = vmatprep.subr.mxu0 0.0
    %86 = vmatpush1.msra.mxu0 0.0
    %87 = vmatprep.subr.mxu0 0.0
    %88 = vmatpush1.msra.mxu0 0.0
    %89 = vmatprep.subr.mxu0 0.0
    %90 = vmatpush1.msra.mxu0 0.0
    %91 = vmatprep.subr.mxu0 0.0
    %92 = vmatpush1.msra.mxu0 0.0
    %93 = vmatprep.subr.mxu0 0.0
    %94 = vmatpush1.msra.mxu0 0.0
    %95 = vmatprep.subr.mxu0 0.0
    %96 = vmatpush1.msra.mxu0 0.0
    %97 = vmatprep.subr.mxu0 0.0
    %98 = vmatpush1.msra.mxu0 0.0
    %99 = vmatprep.subr.mxu0 0.0
    %100 = vmatpush1.msra.mxu0 0.0
    %101 = vmatprep.mubr.f32.mxu0 0.0
    %102 = vmatmul.mubr.f32.gmra.mrb[0].mxu0 %v32
    %v103 = vpop.f32.mrb[0].mxu0
    %v104 = vadd.f32 0.0, %v103
    %v105 = vpop.f32.mrb[0].mxu0
    %106 = vmatprep.mubr.f32.mxu0 0.0
    %107 = vmatmul.mubr.f32.gmra.mrb[0].mxu0 %v35
    %v108 = vpop.f32.mrb[0].mxu0
    %v109 = vadd.f32 0.0, %v108
    %v110 = vpop.f32.mrb[0].mxu0
    %111 = vdwg.mxu0
    %v112 = vld [vmem:[%s3] sm:$0xff]
    %v113 = vld [vmem:[%s3 + $0x8] sm:$0xff]
    %v114 = vld [vmem:[%s4] sm:$0xff]
    %v115 = vld [vmem:[%s4 + $0x8] sm:$0xff]
    %v116 = vmul.f32 %v104, %v112
    %v117 = vmul.f32 %v109, %v113
    %120 = vrot.lane.b32.xlu0 %v114, 32
    %v121 = vpop.permute.xlu0 %120
    %122 = vrot.lane.b32.xlu0 %v115, 32
    %v123 = vpop.permute.xlu0 %122
    %v126 = vmul.f32 %v104, %v121
    %v127 = vmul.f32 %v109, %v123
    %130 = vrot.lane.b32.xlu0 %v126, 96
    %v131 = vpop.permute.xlu0 %130
    %132 = vrot.lane.b32.xlu0 %v127, 96
    %v133 = vpop.permute.xlu0 %132
    %v136 = vadd.f32 %v116, %v131
    %v137 = vadd.f32 %v117, %v133
    %140 = vrot.lane.b32.xlu0 %v112, 64
    %v141 = vpop.permute.xlu0 %140
    %142 = vrot.lane.b32.xlu0 %v113, 64
    %v143 = vpop.permute.xlu0 %142
    %v146 = vmul.f32 %v104, %v141
    %v147 = vmul.f32 %v109, %v143
    %148 = vrot.lane.b32.xlu0 %v114, 80
    %v149 = vpop.permute.xlu0 %148
    %150 = vrot.lane.b32.xlu0 %v115, 80
    %v151 = vpop.permute.xlu0 %150
    %v154 = vmul.f32 %v104, %v149
    %v155 = vmul.f32 %v109, %v151
    %158 = vrot.lane.b32.xlu0 %v154, 112
    %v159 = vpop.permute.xlu0 %158
    %160 = vrot.lane.b32.xlu0 %v155, 112
    %v161 = vpop.permute.xlu0 %160
    %v164 = vadd.f32 %v146, %v159
    %v165 = vadd.f32 %v147, %v161
    %167 = vrot.lane.b32.xlu0 %v136, 120
    %v168 = vpop.permute.xlu0 %167
    %169 = vrot.lane.b32.xlu0 %v136, 112
    %v170 = vpop.permute.xlu0 %169
    %171 = vrot.lane.b32.xlu0 %v136, 104
    %v172 = vpop.permute.xlu0 %171
    %174 = vrot.lane.b32.xlu0 %v137, 120
    %v175 = vpop.permute.xlu0 %174
    %176 = vrot.lane.b32.xlu0 %v137, 112
    %v177 = vpop.permute.xlu0 %176
    %178 = vrot.lane.b32.xlu0 %v137, 104
    %v179 = vpop.permute.xlu0 %178
    %181 = vrot.lane.b32.xlu0 %v164, 120
    %v182 = vpop.permute.xlu0 %181
    %184 = vrot.lane.b32.xlu0 %v165, 120
    %v185 = vpop.permute.xlu0 %184
    %187 = vrot.lane.b32.xlu0 %v104, 120
    %v188 = vpop.permute.xlu0 %187
    %190 = vrot.lane.b32.xlu0 %v109, 120
    %v191 = vpop.permute.xlu0 %190
    %v192 = vld [vmem:[%s5] sm:$0xff]
    %v193 = vld [vmem:[%s5 + $0x8] sm:$0xff]
    %v194 = vld [vmem:[%s5 + $0x10] sm:$0xff]
    %v195 = vld [vmem:[%s5 + $0x18] sm:$0xff]
    %v196 = vld [vmem:[%s5 + $0x20] sm:$0xff]
    %v197 = vld [vmem:[%s5 + $0x28] sm:$0xff]
    %v198 = vld [vmem:[%s5 + $0x30] sm:$0xff]
    %v199 = vld [vmem:[%s5 + $0x38] sm:$0xff]
    %200 = vrot.lane.b32.xlu0 %v164, 64
    %v201 = vpop.permute.xlu0 %200
    %202 = vrot.lane.b32.xlu0 %v182, 64
    %v203 = vpop.permute.xlu0 %202
    %204 = vrot.lane.b32.xlu0 %v165, 64
    %v205 = vpop.permute.xlu0 %204
    %206 = vrot.lane.b32.xlu0 %v185, 64
    %v207 = vpop.permute.xlu0 %206
    %vm208 = vcmask 64512
    %v209 = vsel %vm208, %v136, 0
    %v211 = vsel %vm208, %v168, 0
    %v213 = vsel %vm208, %v170, 0
    %v215 = vsel %vm208, %v172, 0
    %v217 = vsel %vm208, %v137, 0
    %v219 = vsel %vm208, %v175, 0
    %v221 = vsel %vm208, %v177, 0
    %v223 = vsel %vm208, %v179, 0
    %v225 = vsel %vm208, %v201, 0
    %v227 = vsel %vm208, %v203, 0
    %v229 = vsel %vm208, %v205, 0
    %v231 = vsel %vm208, %v207, 0
    %233 = vmatprep.subr.mxu0 0.0
    %234 = vmatpush1.xpose.msra.mxu0 %v225
    %235 = vmatprep.subr.mxu0 0.0
    %236 = vmatpush1.xpose.msra.mxu0 %v225
    %237 = vmatprep.subr.mxu0 0.0
    %238 = vmatpush1.xpose.msra.mxu0 %v227
    %239 = vmatprep.subr.mxu0 0.0
    %240 = vmatpush1.xpose.msra.mxu0 %v227
    %241 = vmatprep.subr.mxu0 0.0
    %242 = vmatpush1.xpose.msra.mxu0 %v229
    %243 = vmatprep.subr.mxu0 0.0
    %244 = vmatpush1.xpose.msra.mxu0 %v229
    %245 = vmatprep.subr.mxu0 0.0
    %246 = vmatpush1.xpose.msra.mxu0 %v231
    %247 = vmatprep.subr.mxu0 0.0
    %248 = vmatpush1.xpose.msra.mxu0 %v231
    %249 = vmatprep.subr.mxu0 0.0
    %250 = vmatpush1.xpose.msra.mxu0 0.0
    %251 = vmatprep.subr.mxu0 0.0
    %252 = vmatpush1.xpose.msra.mxu0 0.0
    %253 = vmatprep.subr.mxu0 0.0
    %254 = vmatpush1.xpose.msra.mxu0 0.0
    %255 = vmatprep.subr.mxu0 0.0
    %256 = vmatpush1.xpose.msra.mxu0 0.0
    %257 = vmatprep.subr.mxu0 0.0
    %258 = vmatpush1.xpose.msra.mxu0 0.0
    %259 = vmatprep.subr.mxu0 0.0
    %260 = vmatpush1.xpose.msra.mxu0 0.0
    %261 = vmatprep.subr.mxu0 0.0
    %262 = vmatpush1.xpose.msra.mxu0 0.0
    %263 = vmatprep.subr.mxu0 0.0
    %264 = vmatpush1.xpose.msra.mxu0 0.0
    %265 = vmatprep.subr.mxu0 0.0
    %266 = vmatpush1.xpose.msra.mxu0 0.0
    %267 = vmatprep.subr.mxu0 0.0
    %268 = vmatpush1.xpose.msra.mxu0 0.0
    %269 = vmatprep.subr.mxu0 0.0
    %270 = vmatpush1.xpose.msra.mxu0 0.0
    %271 = vmatprep.subr.mxu0 0.0
    %272 = vmatpush1.xpose.msra.mxu0 0.0
    %273 = vmatprep.subr.mxu0 0.0
    %274 = vmatpush1.xpose.msra.mxu0 0.0
    %275 = vmatprep.subr.mxu0 0.0
    %276 = vmatpush1.xpose.msra.mxu0 0.0
    %277 = vmatprep.subr.mxu0 0.0
    %278 = vmatpush1.xpose.msra.mxu0 0.0
    %279 = vmatprep.subr.mxu0 0.0
    %280 = vmatpush1.xpose.msra.mxu0 0.0
    %281 = vmatprep.subr.mxu0 0.0
    %282 = vmatpush1.xpose.msra.mxu0 0.0
    %283 = vmatprep.subr.mxu0 0.0
    %284 = vmatpush1.xpose.msra.mxu0 0.0
    %285 = vmatprep.subr.mxu0 0.0
    %286 = vmatpush1.xpose.msra.mxu0 0.0
    %287 = vmatprep.subr.mxu0 0.0
    %288 = vmatpush1.xpose.msra.mxu0 0.0
    %289 = vmatprep.subr.mxu0 0.0
    %290 = vmatpush1.xpose.msra.mxu0 0.0
    %291 = vmatprep.subr.mxu0 0.0
    %292 = vmatpush1.xpose.msra.mxu0 0.0
    %293 = vmatprep.subr.mxu0 0.0
    %294 = vmatpush1.xpose.msra.mxu0 0.0
    %295 = vmatprep.subr.mxu0 0.0
    %296 = vmatpush1.xpose.msra.mxu0 0.0
    %297 = vmatprep.mubr.f32.mxu0 0.0
    %298 = vmatmul.mubr.f32.gmra.mrb[0].mxu0 %v209
    %v299 = vpop.f32.mrb[0].mxu0
    %v300 = vadd.f32 %v192, %v299
    %v301 = vpop.f32.mrb[0].mxu0
    %302 = vmatprep.mubr.f32.mxu0 0.0
    %303 = vmatmul.mubr.f32.gmra.mrb[0].mxu0 %v211
    %v304 = vpop.f32.mrb[0].mxu0
    %v305 = vadd.f32 %v193, %v304
    %v306 = vpop.f32.mrb[0].mxu0
    %307 = vmatprep.mubr.f32.mxu0 0.0
    %308 = vmatmul.mubr.f32.gmra.mrb[0].mxu0 %v213
    %v309 = vpop.f32.mrb[0].mxu0
    %v310 = vadd.f32 %v194, %v309
    %v311 = vpop.f32.mrb[0].mxu0
    %312 = vmatprep.mubr.f32.mxu0 0.0
    %313 = vmatmul.mubr.f32.gmra.mrb[0].mxu0 %v215
    %v314 = vpop.f32.mrb[0].mxu0
    %v315 = vadd.f32 %v195, %v314
    %v316 = vpop.f32.mrb[0].mxu0
    %317 = vmatprep.mubr.f32.mxu0 0.0
    %318 = vmatmul.mubr.f32.gmra.mrb[0].mxu0 %v217
    %v319 = vpop.f32.mrb[0].mxu0
    %v320 = vadd.f32 %v196, %v319
    %v321 = vpop.f32.mrb[0].mxu0
    %322 = vmatprep.mubr.f32.mxu0 0.0
    %323 = vmatmul.mubr.f32.gmra.mrb[0].mxu0 %v219
    %v324 = vpop.f32.mrb[0].mxu0
    %v325 = vadd.f32 %v197, %v324
    %v326 = vpop.f32.mrb[0].mxu0
    %327 = vmatprep.mubr.f32.mxu0 0.0
    %328 = vmatmul.mubr.f32.gmra.mrb[0].mxu0 %v221
    %v329 = vpop.f32.mrb[0].mxu0
    %v330 = vadd.f32 %v198, %v329
    %v331 = vpop.f32.mrb[0].mxu0
    %332 = vmatprep.mubr.f32.mxu0 0.0
    %333 = vmatmul.mubr.f32.gmra.mrb[0].mxu0 %v223
    %v334 = vpop.f32.mrb[0].mxu0
    %v335 = vadd.f32 %v199, %v334
    %v336 = vpop.f32.mrb[0].mxu0
    %337 = vdwg.mxu0
    %vm338 = vcmask 523264
    %v339 = vsel %vm338, %v300, -inf
    %340 = vmax.xlane.f32.xlu0 %v339
    %v341 = vpop.xlane.xlu0 %340
    %v342 = vsel %vm338, %v305, -inf
    %343 = vmax.xlane.f32.xlu0 %v342
    %v344 = vpop.xlane.xlu0 %343
    %v345 = vsel %vm338, %v310, -inf
    %346 = vmax.xlane.f32.xlu0 %v345
    %v347 = vpop.xlane.xlu0 %346
    %v348 = vsel %vm338, %v315, -inf
    %349 = vmax.xlane.f32.xlu0 %v348
    %v350 = vpop.xlane.xlu0 %349
    %v351 = vsel %vm338, %v320, -inf
    %352 = vmax.xlane.f32.xlu0 %v351
    %v353 = vpop.xlane.xlu0 %352
    %v354 = vsel %vm338, %v325, -inf
    %355 = vmax.xlane.f32.xlu0 %v354
    %v356 = vpop.xlane.xlu0 %355
    %v357 = vsel %vm338, %v330, -inf
    %358 = vmax.xlane.f32.xlu0 %v357
    %v359 = vpop.xlane.xlu0 %358
    %v360 = vsel %vm338, %v335, -inf
    %361 = vmax.xlane.f32.xlu0 %v360
    %v362 = vpop.xlane.xlu0 %361
    %v363 = vsub.f32 %v300, %v341
    %v364 = vsub.f32 %v305, %v344
    %v365 = vsub.f32 %v310, %v347
    %v366 = vsub.f32 %v315, %v350
    %v367 = vsub.f32 %v320, %v353
    %v368 = vsub.f32 %v325, %v356
    %v369 = vsub.f32 %v330, %v359
    %v370 = vsub.f32 %v335, %v362
    %v371 = vmul.f32 %v363, 1.442695
    %v372 = vpow.pop %v371
    %v373 = vmul.f32 %v364, 1.442695
    %v374 = vpow.pop %v373
    %v375 = vmul.f32 %v365, 1.442695
    %v376 = vpow.pop %v375
    %v377 = vmul.f32 %v366, 1.442695
    %v378 = vpow.pop %v377
    %v379 = vmul.f32 %v367, 1.442695
    %v380 = vpow.pop %v379
    %v381 = vmul.f32 %v368, 1.442695
    %v382 = vpow.pop %v381
    %v383 = vmul.f32 %v369, 1.442695
    %v384 = vpow.pop %v383
    %v385 = vmul.f32 %v370, 1.442695
    %v386 = vpow.pop %v385
    %v387 = vsel %vm338, %v372, 0.0
    %388 = vadd.xlane.f32.xlu0 %v387
    %v389 = vpop.xlane.xlu0 %388
    %v390 = vsel %vm338, %v374, 0.0
    %391 = vadd.xlane.f32.xlu0 %v390
    %v392 = vpop.xlane.xlu0 %391
    %v393 = vsel %vm338, %v376, 0.0
    %394 = vadd.xlane.f32.xlu0 %v393
    %v395 = vpop.xlane.xlu0 %394
    %v396 = vsel %vm338, %v378, 0.0
    %397 = vadd.xlane.f32.xlu0 %v396
    %v398 = vpop.xlane.xlu0 %397
    %v399 = vsel %vm338, %v380, 0.0
    %400 = vadd.xlane.f32.xlu0 %v399
    %v401 = vpop.xlane.xlu0 %400
    %v402 = vsel %vm338, %v382, 0.0
    %403 = vadd.xlane.f32.xlu0 %v402
    %v404 = vpop.xlane.xlu0 %403
    %v405 = vsel %vm338, %v384, 0.0
    %406 = vadd.xlane.f32.xlu0 %v405
    %v407 = vpop.xlane.xlu0 %406
    %v408 = vsel %vm338, %v386, 0.0
    %409 = vadd.xlane.f32.xlu0 %v408
    %v410 = vpop.xlane.xlu0 %409
    %v411 = vrcp.pop %v389
    %v412 = vrcp.pop %v392
    %v413 = vrcp.pop %v395
    %v414 = vrcp.pop %v398
    %v415 = vrcp.pop %v401
    %v416 = vrcp.pop %v404
    %v417 = vrcp.pop %v407
    %v418 = vrcp.pop %v410
    %v419 = vmul.f32 %v372, %v411
    %v420 = vmul.f32 %v374, %v412
    %v421 = vmul.f32 %v376, %v413
    %v422 = vmul.f32 %v378, %v414
    %v423 = vmul.f32 %v380, %v415
    %v424 = vmul.f32 %v382, %v416
    %v425 = vmul.f32 %v384, %v417
    %v426 = vmul.f32 %v386, %v418
    %427 = vrot.lane.b32.xlu0 %v104, 32
    %v428 = vpop.permute.xlu0 %427
    %429 = vrot.lane.b32.xlu0 %v188, 32
    %v430 = vpop.permute.xlu0 %429
    %431 = vrot.lane.b32.xlu0 %v109, 32
    %v432 = vpop.permute.xlu0 %431
    %433 = vrot.lane.b32.xlu0 %v191, 32
    %v434 = vpop.permute.xlu0 %433
    %v440 = vsel %vm338, %v419, 0
    %v443 = vsel %vm338, %v420, 0
    %v446 = vsel %vm338, %v421, 0
    %v449 = vsel %vm338, %v422, 0
    %v452 = vsel %vm338, %v423, 0
    %v455 = vsel %vm338, %v424, 0
    %v458 = vsel %vm338, %v425, 0
    %v461 = vsel %vm338, %v426, 0
    %463 = vmatprep.subr.mxu0 0.0
    %464 = vmatpush1.msra.mxu0 %v428
    %465 = vmatprep.subr.mxu0 0.0
    %466 = vmatpush1.msra.mxu0 %v428
    %467 = vmatprep.subr.mxu0 0.0
    %468 = vmatpush1.msra.mxu0 %v430
    %469 = vmatprep.subr.mxu0 0.0
    %470 = vmatpush1.msra.mxu0 %v430
    %471 = vmatprep.subr.mxu0 0.0
    %472 = vmatpush1.msra.mxu0 %v432
    %473 = vmatprep.subr.mxu0 0.0
    %474 = vmatpush1.msra.mxu0 %v432
    %475 = vmatprep.subr.mxu0 0.0
    %476 = vmatpush1.msra.mxu0 %v434
    %477 = vmatprep.subr.mxu0 0.0
    %478 = vmatpush1.msra.mxu0 %v434
    %479 = vmatprep.subr.mxu0 0.0
    %480 = vmatpush1.msra.mxu0 0.0
    %481 = vmatprep.subr.mxu0 0.0
    %482 = vmatpush1.msra.mxu0 0.0
    %483 = vmatprep.subr.mxu0 0.0
    %484 = vmatpush1.msra.mxu0 0.0
    %485 = vmatprep.subr.mxu0 0.0
    %486 = vmatpush1.msra.mxu0 0.0
    %487 = vmatprep.subr.mxu0 0.0
    %488 = vmatpush1.msra.mxu0 0.0
    %489 = vmatprep.subr.mxu0 0.0
    %490 = vmatpush1.msra.mxu0 0.0
    %491 = vmatprep.subr.mxu0 0.0
    %492 = vmatpush1.msra.mxu0 0.0
    %493 = vmatprep.subr.mxu0 0.0
    %494 = vmatpush1.msra.mxu0 0.0
    %495 = vmatprep.subr.mxu0 0.0
    %496 = vmatpush1.msra.mxu0 0.0
    %497 = vmatprep.subr.mxu0 0.0
    %498 = vmatpush1.msra.mxu0 0.0
    %499 = vmatprep.subr.mxu0 0.0
    %500 = vmatpush1.msra.mxu0 0.0
    %501 = vmatprep.subr.mxu0 0.0
    %502 = vmatpush1.msra.mxu0 0.0
    %503 = vmatprep.subr.mxu0 0.0
    %504 = vmatpush1.msra.mxu0 0.0
    %505 = vmatprep.subr.mxu0 0.0
    %506 = vmatpush1.msra.mxu0 0.0
    %507 = vmatprep.subr.mxu0 0.0
    %508 = vmatpush1.msra.mxu0 0.0
    %509 = vmatprep.subr.mxu0 0.0
    %510 = vmatpush1.msra.mxu0 0.0
    %511 = vmatprep.subr.mxu0 0.0
    %512 = vmatpush1.msra.mxu0 0.0
    %513 = vmatprep.subr.mxu0 0.0
    %514 = vmatpush1.msra.mxu0 0.0
    %515 = vmatprep.subr.mxu0 0.0
    %516 = vmatpush1.msra.mxu0 0.0
    %517 = vmatprep.subr.mxu0 0.0
    %518 = vmatpush1.msra.mxu0 0.0
    %519 = vmatprep.subr.mxu0 0.0
    %520 = vmatpush1.msra.mxu0 0.0
    %521 = vmatprep.subr.mxu0 0.0
    %522 = vmatpush1.msra.mxu0 0.0
    %523 = vmatprep.subr.mxu0 0.0
    %524 = vmatpush1.msra.mxu0 0.0
    %525 = vmatprep.subr.mxu0 0.0
    %526 = vmatpush1.msra.mxu0 0.0
    %527 = vmatprep.mubr.f32.mxu0 0.0
    %528 = vmatmul.mubr.f32.gmra.mrb[0].mxu0 %v440
    %v529 = vpop.f32.mrb[0].mxu0
    %v530 = vadd.f32 0.0, %v529
    %v531 = vpop.f32.mrb[0].mxu0
    %532 = vmatprep.mubr.f32.mxu0 0.0
    %533 = vmatmul.mubr.f32.gmra.mrb[0].mxu0 %v443
    %v534 = vpop.f32.mrb[0].mxu0
    %v535 = vadd.f32 0.0, %v534
    %v536 = vpop.f32.mrb[0].mxu0
    %537 = vmatprep.mubr.f32.mxu0 0.0
    %538 = vmatmul.mubr.f32.gmra.mrb[0].mxu0 %v446
    %v539 = vpop.f32.mrb[0].mxu0
    %v540 = vadd.f32 0.0, %v539
    %v541 = vpop.f32.mrb[0].mxu0
    %542 = vmatprep.mubr.f32.mxu0 0.0
    %543 = vmatmul.mubr.f32.gmra.mrb[0].mxu0 %v449
    %v544 = vpop.f32.mrb[0].mxu0
    %v545 = vadd.f32 0.0, %v544
    %v546 = vpop.f32.mrb[0].mxu0
    %547 = vmatprep.mubr.f32.mxu0 0.0
    %548 = vmatmul.mubr.f32.gmra.mrb[0].mxu0 %v452
    %v549 = vpop.f32.mrb[0].mxu0
    %v550 = vadd.f32 0.0, %v549
    %v551 = vpop.f32.mrb[0].mxu0
    %552 = vmatprep.mubr.f32.mxu0 0.0
    %553 = vmatmul.mubr.f32.gmra.mrb[0].mxu0 %v455
    %v554 = vpop.f32.mrb[0].mxu0
    %v555 = vadd.f32 0.0, %v554
    %v556 = vpop.f32.mrb[0].mxu0
    %557 = vmatprep.mubr.f32.mxu0 0.0
    %558 = vmatmul.mubr.f32.gmra.mrb[0].mxu0 %v458
    %v559 = vpop.f32.mrb[0].mxu0
    %v560 = vadd.f32 0.0, %v559
    %v561 = vpop.f32.mrb[0].mxu0
    %562 = vmatprep.mubr.f32.mxu0 0.0
    %563 = vmatmul.mubr.f32.gmra.mrb[0].mxu0 %v461
    %v564 = vpop.f32.mrb[0].mxu0
    %v565 = vadd.f32 0.0, %v564
    %v566 = vpop.f32.mrb[0].mxu0
    %567 = vdwg.mxu0
    %570 = vrot.lane.b32.xlu0 %v535, 8
    %v571 = vpop.permute.xlu0 %570
    %572 = vrot.lane.b32.xlu0 %v555, 8
    %v573 = vpop.permute.xlu0 %572
    %578 = vrot.lane.b32.xlu0 %v540, 16
    %v579 = vpop.permute.xlu0 %578
    %580 = vrot.lane.b32.xlu0 %v560, 16
    %v581 = vpop.permute.xlu0 %580
    %586 = vrot.lane.b32.xlu0 %v545, 24
    %v587 = vpop.permute.xlu0 %586
    %588 = vrot.lane.b32.xlu0 %v565, 24
    %v589 = vpop.permute.xlu0 %588
    %v592 = vsel %vm208, %v530, %v571
    %v593 = vsel %vm208, %v550, %v573
    %vm594 = vcmask 130048
    %v595 = vsel %vm594, %v592, %v579
    %v596 = vsel %vm594, %v593, %v581
    %vm597 = vcmask 195584
    %v598 = vsel %vm597, %v595, %v587
    %v599 = vsel %vm597, %v596, %v589
    %v600 = vld [vmem:[%s2] sm:$0xff]
    %v601 = vld [vmem:[%s2 + $0x8] sm:$0xff]
    %v602 = vld [vmem:[%s2 + $0x10] sm:$0xff]
    %v603 = vld [vmem:[%s2 + $0x18] sm:$0xff]
    %v605 = vsel %vm30, %v598, 0
    %v608 = vsel %vm30, %v599, 0
    %610 = vmatprep.subr.mxu0 0.0
    %611 = vmatpush1.msra.mxu0 %v600
    %612 = vmatprep.subr.mxu0 0.0
    %613 = vmatpush1.msra.mxu0 %v601
    %614 = vmatprep.subr.mxu0 0.0
    %615 = vmatpush1.msra.mxu0 %v602
    %616 = vmatprep.subr.mxu0 0.0
    %617 = vmatpush1.msra.mxu0 %v603
    %618 = vmatprep.subr.mxu0 0.0
    %619 = vmatpush1.msra.mxu0 0.0
    %620 = vmatprep.subr.mxu0 0.0
    %621 = vmatpush1.msra.mxu0 0.0
    %622 = vmatprep.subr.mxu0 0.0
    %623 = vmatpush1.msra.mxu0 0.0
    %624 = vmatprep.subr.mxu0 0.0
    %625 = vmatpush1.msra.mxu0 0.0
    %626 = vmatprep.subr.mxu0 0.0
    %627 = vmatpush1.msra.mxu0 0.0
    %628 = vmatprep.subr.mxu0 0.0
    %629 = vmatpush1.msra.mxu0 0.0
    %630 = vmatprep.subr.mxu0 0.0
    %631 = vmatpush1.msra.mxu0 0.0
    %632 = vmatprep.subr.mxu0 0.0
    %633 = vmatpush1.msra.mxu0 0.0
    %634 = vmatprep.subr.mxu0 0.0
    %635 = vmatpush1.msra.mxu0 0.0
    %636 = vmatprep.subr.mxu0 0.0
    %637 = vmatpush1.msra.mxu0 0.0
    %638 = vmatprep.subr.mxu0 0.0
    %639 = vmatpush1.msra.mxu0 0.0
    %640 = vmatprep.subr.mxu0 0.0
    %641 = vmatpush1.msra.mxu0 0.0
    %642 = vmatprep.subr.mxu0 0.0
    %643 = vmatpush1.msra.mxu0 0.0
    %644 = vmatprep.subr.mxu0 0.0
    %645 = vmatpush1.msra.mxu0 0.0
    %646 = vmatprep.subr.mxu0 0.0
    %647 = vmatpush1.msra.mxu0 0.0
    %648 = vmatprep.subr.mxu0 0.0
    %649 = vmatpush1.msra.mxu0 0.0
    %650 = vmatprep.subr.mxu0 0.0
    %651 = vmatpush1.msra.mxu0 0.0
    %652 = vmatprep.subr.mxu0 0.0
    %653 = vmatpush1.msra.mxu0 0.0
    %654 = vmatprep.subr.mxu0 0.0
    %655 = vmatpush1.msra.mxu0 0.0
    %656 = vmatprep.subr.mxu0 0.0
    %657 = vmatpush1.msra.mxu0 0.0
    %658 = vmatprep.subr.mxu0 0.0
    %659 = vmatpush1.msra.mxu0 0.0
    %660 = vmatprep.subr.mxu0 0.0
    %661 = vmatpush1.msra.mxu0 0.0
    %662 = vmatprep.subr.mxu0 0.0
    %663 = vmatpush1.msra.mxu0 0.0
    %664 = vmatprep.subr.mxu0 0.0
    %665 = vmatpush1.msra.mxu0 0.0
    %666 = vmatprep.subr.mxu0 0.0
    %667 = vmatpush1.msra.mxu0 0.0
    %668 = vmatprep.subr.mxu0 0.0
    %669 = vmatpush1.msra.mxu0 0.0
    %670 = vmatprep.subr.mxu0 0.0
    %671 = vmatpush1.msra.mxu0 0.0
    %672 = vmatprep.subr.mxu0 0.0
    %673 = vmatpush1.msra.mxu0 0.0
    %674 = vmatprep.mubr.f32.mxu0 0.0
    %675 = vmatmul.mubr.f32.gmra.mrb[0].mxu0 %v605
    %v676 = vpop.f32.mrb[0].mxu0
    %v677 = vadd.f32 0.0, %v676
    %v678 = vpop.f32.mrb[0].mxu0
    %679 = vmatprep.mubr.f32.mxu0 0.0
    %680 = vmatmul.mubr.f32.gmra.mrb[0].mxu0 %v608
    %v681 = vpop.f32.mrb[0].mxu0
    %v682 = vadd.f32 0.0, %v681
    %v683 = vpop.f32.mrb[0].mxu0
    %684 = vdwg.mxu0
    %685 = vst.msk [vmem:[#allocation2] sm:$0xff] %vm30, %v677
    %686 = vst.msk [vmem:[#allocation2 + $0x8] sm:$0xff] %vm30, %v682
    // Predicated region
    $region26: #{mistral_attention_morph_forward.1} parent=1 // pred_check
      _
    $region27: #{mistral_attention_morph_forward.1} parent=1 // pred_check_branch
      %688 = sbr.rel (0) target = $region29
    $region28: #{mistral_attention_morph_forward.1} parent=1 // pred_region
      %s690 = ssub.s32 256, 256
      %691 = vsyncadd [#allocation3], %s690
      %s692 = sshll.u32 [#allocation2], 4
      %s693 = int_to_ptr.vmem [resolvable:$true] %s692
      %698 = dma.vmem_to_hbm [thread:$0]  %s693, 256, %s6, [#allocation3], 128, 128, 8
    $region29: #{mistral_attention_morph_forward.1} parent=1 // pred_fallthru
      _
    // Predicated region
    $region30: #{mistral_attention_morph_forward.1} parent=1 // pred_check
      _
    $region31: #{mistral_attention_morph_forward.1} parent=1 // pred_check_branch
      %700 = sbr.rel (0) target = $region33
    $region32: #{mistral_attention_morph_forward.1} parent=1 // pred_region
      %701 = dma.done [#allocation3], 256
    $region33: #{mistral_attention_morph_forward.1} parent=1 // pred_fallthru
      _
    %702 = vsyncpa [#allocation3], 1

</llo_original>
